<compile_context>
chip_gen: v6e
topology: v6e:2x2x1
jax: 0.10.0
libtpu: 0.0.40
codegen_flags: <defaults>
</compile_context>

<pallas_src>
from typing import NamedTuple

import jax
import jax.numpy as jnp
from jax.experimental import pallas as pl
from jax.experimental.pallas import tpu as pltpu


def _round_up(x, m):
    return (x + m - 1) // m * m


def _row_tiling(n_rows_raw, tm):
    """Pick a row tile (multiple of 16) and padded row count.

    Splits a single oversized row block into two so that on v7x (2 TCs) the
    "parallel" row axis actually keeps both cores busy, while keeping each
    block big enough (>=256 rows) that the W2 stream stays MXU-bound.
    """
    n_rows = _round_up(max(n_rows_raw, 1), 16)
    nb = -(-n_rows // tm)  # ceil
    if nb == 1 and n_rows >= 512:
        nb = 2
    tm_eff = _round_up(-(-n_rows // nb), 16)
    return tm_eff, nb * tm_eff


# ----------------------------------------------------------------------------
# Fused head kernel: Linear -> GeLU -> LayerNorm -> Linear
# grid = (row blocks i [parallel], vocab tiles j [arbitrary, innermost])
# ----------------------------------------------------------------------------
def logit_fc_kernel(x_ref, w1_ref, b1_ref, g_ref, beta_ref, w2_ref, b2_ref,
                    o_ref, h_ref):
    # Prologue: Linear1 + GeLU + LayerNorm once per row block; cache the
    # post-LN activation (bf16) in VMEM scratch for all vocab tiles.
    # NOTE: this caching is only correct while the vocab axis stays
    # "arbitrary" (sequential, innermost) on a single core.
    @pl.when(pl.program_id(1) == 0)
    def _():
        # bf16 x bf16 -> f32 accumulation on the MXU
        h = jnp.dot(x_ref[...], w1_ref[...],
                    preferred_element_type=jnp.float32)
        h = h + b1_ref[...].astype(jnp.float32)

        # GeLU (exact erf form, matching BERT's GeLU used in LXMERT)
        h = 0.5 * h * (1.0 + jax.lax.erf(h * 0.7071067811865476))

        # BertLayerNorm over the last dim, eps = 1e-12; two-pass variance in
        # f32 for better numerics.
        mu = jnp.mean(h, axis=-1, keepdims=True)
        d = h - mu
        var = jnp.mean(d * d, axis=-1, keepdims=True)
        h = d * jax.lax.rsqrt(var + 1e-12)
        h = h * g_ref[...].astype(jnp.float32) + beta_ref[...].astype(jnp.float32)
        # Cached as bf16 (one extra rounding vs. a pure f32 pipeline).
        h_ref[...] = h.astype(h_ref.dtype)

    # Inner loop body: (tm, 2H) bf16 @ (2H, tn) bf16 -> f32, lane-dense store.
    out = jnp.dot(h_ref[...], w2_ref[...], preferred_element_type=jnp.float32)
    o_ref[...] = (out + b2_ref[...].astype(jnp.float32)).astype(o_ref.dtype)


class PreparedHeadParams(NamedTuple):
    w1: jax.Array      # (H, H2)      bf16
    b1: jax.Array      # (1, H2)      f32
    gamma: jax.Array   # (1, H2)      f32
    beta: jax.Array    # (1, H2)      f32
    w2: jax.Array      # (H2, v_pad)  bf16, padded along vocab
    b2: jax.Array      # (1, v_pad)   f32,  padded along vocab
    vocab_size: int    # original V (for slicing)
    tn: int            # vocab tile used for padding


def prepare_head_params(params, *, tn=1024):
    """One-time prep: cast matmul weights to bf16, pad vocab dim, reshape
    1-D vectors to lane-dense rank-2.  Do this at parameter-setup time, NOT
    per forward call."""
    w1, b1, gamma, beta, w2, b2 = params
    H2, V = w2.shape
    tn_eff = min(tn, _round_up(V, 128))
    v_pad = _round_up(V, tn_eff)

    w2b = w2.astype(jnp.bfloat16)
    b2p = b2.astype(jnp.float32)
    if v_pad != V:
        w2b = jnp.pad(w2b, ((0, 0), (0, v_pad - V)))
        b2p = jnp.pad(b2p, (0, v_pad - V))

    return PreparedHeadParams(
        w1=w1.astype(jnp.bfloat16),
        b1=b1.astype(jnp.float32).reshape(1, -1),
        gamma=gamma.astype(jnp.float32).reshape(1, -1),
        beta=beta.astype(jnp.float32).reshape(1, -1),
        w2=w2b,
        b2=b2p.reshape(1, -1),
        vocab_size=V,
        tn=tn_eff,
    )


def logit_fc(lang_feat, p: PreparedHeadParams, *, tm=1024,
             out_dtype=jnp.bfloat16):
    """lang_feat: (B, T, H) -> logits (B, T, V) in `out_dtype`."""
    B, T, H = lang_feat.shape
    H2 = p.w1.shape[1]
    v_pad = p.w2.shape[1]
    V = p.vocab_size
    tn_eff = p.tn
    N = B * T

    tm_eff, n_pad = _row_tiling(N, tm)

    # bf16 activations for the MXU (accumulation stays f32 inside the kernel).
    x = lang_feat.reshape(N, H).astype(jnp.bfloat16)
    if n_pad != N:
        x = jnp.pad(x, ((0, n_pad - N), (0, 0)))

    grid = (n_pad // tm_eff, v_pad // tn_eff)
    out_itemsize = jnp.dtype(out_dtype).itemsize

    # VMEM budget: inputs/outputs double-buffered + bf16 h scratch.
    vmem_need = (
        2 * tm_eff * H * 2            # x rows (bf16, 2 buffers)
        + 2 * H * H2 * 2              # W1 (bf16, 2 buffers)
        + 2 * 3 * H2 * 4              # b1 / gamma / beta (f32)
        + 2 * H2 * tn_eff * 2         # W2 vocab tile (bf16, 2 buffers)
        + 2 * tn_eff * 4              # b2 vocab tile
        + 2 * tm_eff * tn_eff * out_itemsize   # output tile (2 buffers)
        + tm_eff * H2 * 2             # post-LN h scratch (bf16)
    )
    vmem_limit = int(min(max(32 * 1024 * 1024, vmem_need * 5 // 4),
                         56 * 1024 * 1024))

    cost = pl.CostEstimate(
        flops=2 * n_pad * H * H2 + 2 * n_pad * H2 * v_pad,
        transcendentals=n_pad * H2,                       # erf in GeLU
        bytes_accessed=(n_pad * H * 2                     # x read
                        + H * H2 * 2                      # W1 read
                        + grid[0] * H2 * v_pad * 2        # W2 streamed per row blk
                        + n_pad * v_pad * out_itemsize),  # logits writeback
    )

    out = pl.pallas_call(
        logit_fc_kernel,
        out_shape=jax.ShapeDtypeStruct((n_pad, v_pad), out_dtype),
        grid_spec=pltpu.PrefetchScalarGridSpec(
            num_scalar_prefetch=0,
            grid=grid,
            in_specs=[
                pl.BlockSpec((tm_eff, H), lambda i, j: (i, 0)),    # x rows
                pl.BlockSpec((H, H2), lambda i, j: (0, 0)),        # W1 (resident)
                pl.BlockSpec((1, H2), lambda i, j: (0, 0)),        # b1
                pl.BlockSpec((1, H2), lambda i, j: (0, 0)),        # gamma
                pl.BlockSpec((1, H2), lambda i, j: (0, 0)),        # beta
                pl.BlockSpec((H2, tn_eff), lambda i, j: (0, j)),   # W2 vocab tile
                pl.BlockSpec((1, tn_eff), lambda i, j: (0, j)),    # b2 vocab tile
            ],
            out_specs=pl.BlockSpec((tm_eff, tn_eff), lambda i, j: (i, j)),
            scratch_shapes=[pltpu.VMEM((tm_eff, H2), jnp.bfloat16)],  # post-LN h
        ),
        compiler_params=pltpu.CompilerParams(
            dimension_semantics=("parallel", "arbitrary"),
            vmem_limit_bytes=vmem_limit,
        ),
        cost_estimate=cost,
    )(x, p.w1, p.b1, p.gamma, p.beta, p.w2, p.b2)

    return out[:N, :V].reshape(B, T, V)


# ----------------------------------------------------------------------------
# Deterministic parameter init (BERT-style: N(0, 0.02) weights, zero biases,
# LayerNorm gamma=1 / beta=0).  Linear weights are stored already transposed
# as (in, out) so the kernel does plain x @ W.
# ----------------------------------------------------------------------------
def init_params(key, hid_dim, vocab_size):
    k1, k2 = jax.random.split(key, 2)
    w1 = (0.02 * jax.random.normal(k1, (hid_dim, hid_dim * 2))).astype(jnp.float32)
    b1 = jnp.zeros((hid_dim * 2,), jnp.float32)
    gamma = jnp.ones((hid_dim * 2,), jnp.float32)
    beta = jnp.zeros((hid_dim * 2,), jnp.float32)
    w2 = (0.02 * jax.random.normal(k2, (hid_dim * 2, vocab_size))).astype(jnp.float32)
    b2 = jnp.zeros((vocab_size,), jnp.float32)
    return (w1, b1, gamma, beta, w2, b2)


# ----------------------------------------------------------------------------
# Stand-in language encoder (plain JAX glue).
# TODO(synk): the real LXRTEncoder is a full LXMERT transformer with a
# WordPiece tokenizer on python strings; not implemented here.  This stand-in
# deterministically maps (feat, pos, sent_ids) -> lang_feat (B, T, H).
# ----------------------------------------------------------------------------
def stand_in_encoder(feat, pos, sent_ids, enc_params):
    emb, wv, wp = enc_params
    tok = emb[sent_ids]                                   # (B, T, H)
    vis = jnp.mean(feat @ wv + pos @ wp, axis=1)          # (B, H)
    return jnp.tanh(tok + vis[:, None, :])                # (B, T, H)


def init_encoder_params(key, f_dim, hid_dim, vocab_size):
    k1, k2, k3 = jax.random.split(key, 3)
    emb = (0.02 * jax.random.normal(k1, (vocab_size, hid_dim))).astype(jnp.float32)
    wv = (0.02 * jax.random.normal(k2, (f_dim, hid_dim))).astype(jnp.float32)
    wp = (0.02 * jax.random.normal(k3, (4, hid_dim))).astype(jnp.float32)
    return (emb, wv, wp)


def iu_model_forward(feat, pos, sent_ids, enc_params, head_params_prepped):
    lang_feat = stand_in_encoder(feat, pos, sent_ids, enc_params)
    return logit_fc(lang_feat, head_params_prepped)


# ----------------------------------------------------------------------------
# Reference (pure JAX) for the Pallas head.  Mirrors the kernel's numerics:
# bf16-rounded matmul operands, f32 accumulation, bf16-cached post-LN h.
# ----------------------------------------------------------------------------
def logit_fc_ref(lang_feat, params):
    w1, b1, gamma, beta, w2, b2 = params
    x = lang_feat.astype(jnp.bfloat16).astype(jnp.float32)
    w1f = w1.astype(jnp.bfloat16).astype(jnp.float32)
    w2f = w2.astype(jnp.bfloat16).astype(jnp.float32)
    h = x @ w1f + b1
    h = 0.5 * h * (1.0 + jax.lax.erf(h / jnp.sqrt(2.0)))
    mu = jnp.mean(h, axis=-1, keepdims=True)
    var = jnp.mean((h - mu) ** 2, axis=-1, keepdims=True)
    h = (h - mu) * jax.lax.rsqrt(var + 1e-12) * gamma + beta
    h = h.astype(jnp.bfloat16).astype(jnp.float32)   # kernel caches h as bf16
    return h @ w2f + b2


if __name__ == "__main__":
    # Small shapes consistent with the module's forward:
    #   feat: (b, o, f), pos: (b, o, 4), sent: (b, T) token ids (T <= 20)
    B, O, F = 2, 4, 16
    T = 8                    # <= MAX_VQA_LENGTH = 20
    HID = 32                 # lxrt_encoder.dim
    VOCAB = 64               # tokenizer vocab size (synthetic)

    key = jax.random.PRNGKey(0)
    k_feat, k_pos, k_sent, k_head, k_enc = jax.random.split(key, 5)

    feat = jax.random.normal(k_feat, (B, O, F), jnp.float32)
    pos = jax.random.uniform(k_pos, (B, O, 4), jnp.float32)
    sent_ids = jax.random.randint(k_sent, (B, T), 0, VOCAB)

    head_params = init_params(k_head, HID, VOCAB)
    head_prepped = prepare_head_params(head_params)        # one-time prep
    enc_params = init_encoder_params(k_enc, F, HID, VOCAB)

    logits = iu_model_forward(feat, pos, sent_ids, enc_params, head_prepped)
    logits = jax.block_until_ready(logits)

    # sanity check vs pure-JAX reference of the head (bf16 logits tolerance)
    lang_feat = stand_in_encoder(feat, pos, sent_ids, enc_params)
    ref = logit_fc_ref(lang_feat, head_params)
    assert logits.shape == (B, T, VOCAB)
    assert logits.dtype == jnp.bfloat16
    out_f32 = logits.astype(jnp.float32)
    assert bool(jnp.all(jnp.isfinite(out_f32)))
    assert jnp.allclose(out_f32, ref, atol=2e-2, rtol=2e-2)

    print("KERNEL_OK")
</pallas_src>

<mosaic_0001>
module attributes {stable_mosaic.version = 11 : i64} {
  func.func @logit_fc_kernel(%arg0: i32, %arg1: i32, %arg2: memref<16x32xbf16, #tpu.memory_space<vmem>>, %arg3: memref<32x64xbf16, #tpu.memory_space<vmem>>, %arg4: memref<1x64xf32, #tpu.memory_space<vmem>>, %arg5: memref<1x64xf32, #tpu.memory_space<vmem>>, %arg6: memref<1x64xf32, #tpu.memory_space<vmem>>, %arg7: memref<64x128xbf16, #tpu.memory_space<vmem>>, %arg8: memref<1x128xf32, #tpu.memory_space<vmem>>, %arg9: memref<16x128xbf16, #tpu.memory_space<vmem>>, %arg10: memref<16x64xbf16, #tpu.memory_space<vmem>>) attributes {dimension_semantics = [#tpu.dimension_semantics<parallel>, #tpu.dimension_semantics<arbitrary>], iteration_bounds = array<i64: 1, 1>, scalar_prefetch = 0 : i64, scratch_operands = 1 : i64, tpu.core_type = #tpu.core_type<tc>, window_params = [{transform_indices = @transform_0, window_bounds = array<i64: 16, 32>}, {pipeline_mode = #tpu.pipeline_mode<synchronous>, transform_indices = @transform_1, window_bounds = array<i64: 32, 64>}, {pipeline_mode = #tpu.pipeline_mode<synchronous>, transform_indices = @transform_2, window_bounds = array<i64: 1, 64>}, {pipeline_mode = #tpu.pipeline_mode<synchronous>, transform_indices = @transform_3, window_bounds = array<i64: 1, 64>}, {pipeline_mode = #tpu.pipeline_mode<synchronous>, transform_indices = @transform_4, window_bounds = array<i64: 1, 64>}, {transform_indices = @transform_5, window_bounds = array<i64: 64, 128>}, {transform_indices = @transform_6, window_bounds = array<i64: 1, 128>}, {transform_indices = @transform_7, window_bounds = array<i64: 16, 128>}]} {
    %c0_i32 = arith.constant 0 : i32
    %0 = arith.cmpi eq, %arg1, %c0_i32 : i32
    %1 = arith.extui %0 : i1 to i32
    %c0_i32_0 = arith.constant 0 : i32
    %2 = arith.cmpi ne, %1, %c0_i32_0 : i32
    scf.if %2 {
      %c0_8 = arith.constant 0 : index
      %c0_9 = arith.constant 0 : index
      %11 = vector.load %arg2[%c0_8, %c0_9] : memref<16x32xbf16, #tpu.memory_space<vmem>>, vector<16x32xbf16>
      %c0_10 = arith.constant 0 : index
      %c0_11 = arith.constant 0 : index
      %12 = vector.load %arg3[%c0_10, %c0_11] : memref<32x64xbf16, #tpu.memory_space<vmem>>, vector<32x64xbf16>
      %cst_12 = arith.constant dense<0.000000e+00> : vector<16x64xf32>
      %13 = tpu.matmul %11, %12, %cst_12 {dimension_numbers = #tpu.dot_dimension_numbers<[1], [0], [0], [1], [0, 0, 1, 1], [], []>} : vector<16x32xbf16>, vector<32x64xbf16>, vector<16x64xf32> -> vector<16x64xf32>
      %c0_13 = arith.constant 0 : index
      %c0_14 = arith.constant 0 : index
      %14 = vector.load %arg4[%c0_13, %c0_14] : memref<1x64xf32, #tpu.memory_space<vmem>>, vector<1x64xf32>
      %15 = vector.broadcast %14 : vector<1x64xf32> to vector<16x64xf32>
      %16 = arith.addf %13, %15 : vector<16x64xf32>
      %cst_15 = arith.constant 5.000000e-01 : f32
      %17 = vector.broadcast %cst_15 : f32 to vector<16x64xf32>
      %18 = arith.mulf %17, %16 : vector<16x64xf32>
      %cst_16 = arith.constant 0.707106769 : f32
      %19 = vector.broadcast %cst_16 : f32 to vector<16x64xf32>
      %20 = arith.mulf %16, %19 : vector<16x64xf32>
      %21 = math.erf %20 : vector<16x64xf32>
      %cst_17 = arith.constant 1.000000e+00 : f32
      %22 = vector.broadcast %cst_17 : f32 to vector<16x64xf32>
      %23 = arith.addf %22, %21 : vector<16x64xf32>
      %24 = arith.mulf %18, %23 : vector<16x64xf32>
      %cst_18 = arith.constant dense<0.000000e+00> : vector<16xf32>
      %25 = vector.multi_reduction <add>, %24, %cst_18 [1] : vector<16x64xf32> to vector<16xf32>
      %26 = vector.shape_cast %25 : vector<16xf32> to vector<16x1xf32>
      %cst_19 = arith.constant 6.400000e+01 : f32
      %27 = vector.broadcast %cst_19 : f32 to vector<16x1xf32>
      %28 = arith.divf %26, %27 : vector<16x1xf32>
      %29 = vector.broadcast %28 : vector<16x1xf32> to vector<16x64xf32>
      %30 = arith.subf %24, %29 : vector<16x64xf32>
      %31 = arith.mulf %30, %30 : vector<16x64xf32>
      %cst_20 = arith.constant dense<0.000000e+00> : vector<16xf32>
      %32 = vector.multi_reduction <add>, %31, %cst_20 [1] : vector<16x64xf32> to vector<16xf32>
      %33 = vector.shape_cast %32 : vector<16xf32> to vector<16x1xf32>
      %cst_21 = arith.constant 6.400000e+01 : f32
      %34 = vector.broadcast %cst_21 : f32 to vector<16x1xf32>
      %35 = arith.divf %33, %34 : vector<16x1xf32>
      %cst_22 = arith.constant 9.99999996E-13 : f32
      %36 = vector.broadcast %cst_22 : f32 to vector<16x1xf32>
      %37 = arith.addf %35, %36 : vector<16x1xf32>
      %38 = math.rsqrt %37 : vector<16x1xf32>
      %39 = vector.broadcast %38 : vector<16x1xf32> to vector<16x64xf32>
      %40 = arith.mulf %30, %39 : vector<16x64xf32>
      %c0_23 = arith.constant 0 : index
      %c0_24 = arith.constant 0 : index
      %41 = vector.load %arg5[%c0_23, %c0_24] : memref<1x64xf32, #tpu.memory_space<vmem>>, vector<1x64xf32>
      %42 = vector.broadcast %41 : vector<1x64xf32> to vector<16x64xf32>
      %43 = arith.mulf %40, %42 : vector<16x64xf32>
      %c0_25 = arith.constant 0 : index
      %c0_26 = arith.constant 0 : index
      %44 = vector.load %arg6[%c0_25, %c0_26] : memref<1x64xf32, #tpu.memory_space<vmem>>, vector<1x64xf32>
      %45 = vector.broadcast %44 : vector<1x64xf32> to vector<16x64xf32>
      %46 = arith.addf %43, %45 : vector<16x64xf32>
      %47 = arith.truncf %46 : vector<16x64xf32> to vector<16x64xbf16>
      %c0_27 = arith.constant 0 : index
      %c0_28 = arith.constant 0 : index
      %48 = vector.load %arg10[%c0_27, %c0_28] : memref<16x64xbf16, #tpu.memory_space<vmem>>, vector<16x64xbf16>
      tpu.vector_store %arg10[%c0_27, %c0_28], %47 {strides = array<i32>} : memref<16x64xbf16, #tpu.memory_space<vmem>>, vector<16x64xbf16>,
    } else {
    }
    %c0 = arith.constant 0 : index
    %c0_1 = arith.constant 0 : index
    %3 = vector.load %arg10[%c0, %c0_1] : memref<16x64xbf16, #tpu.memory_space<vmem>>, vector<16x64xbf16>
    %c0_2 = arith.constant 0 : index
    %c0_3 = arith.constant 0 : index
    %4 = vector.load %arg7[%c0_2, %c0_3] : memref<64x128xbf16, #tpu.memory_space<vmem>>, vector<64x128xbf16>
    %cst = arith.constant dense<0.000000e+00> : vector<16x128xf32>
    %5 = tpu.matmul %3, %4, %cst {dimension_numbers = #tpu.dot_dimension_numbers<[1], [0], [0], [1], [0, 0, 1, 1], [], []>} : vector<16x64xbf16>, vector<64x128xbf16>, vector<16x128xf32> -> vector<16x128xf32>
    %c0_4 = arith.constant 0 : index
    %c0_5 = arith.constant 0 : index
    %6 = vector.load %arg8[%c0_4, %c0_5] : memref<1x128xf32, #tpu.memory_space<vmem>>, vector<1x128xf32>
    %7 = vector.broadcast %6 : vector<1x128xf32> to vector<16x128xf32>
    %8 = arith.addf %5, %7 : vector<16x128xf32>
    %9 = arith.truncf %8 : vector<16x128xf32> to vector<16x128xbf16>
    %c0_6 = arith.constant 0 : index
    %c0_7 = arith.constant 0 : index
    %10 = vector.load %arg9[%c0_6, %c0_7] : memref<16x128xbf16, #tpu.memory_space<vmem>>, vector<16x128xbf16>
    tpu.vector_store %arg9[%c0_6, %c0_7], %9 {strides = array<i32>} : memref<16x128xbf16, #tpu.memory_space<vmem>>, vector<16x128xbf16>,
    return
  }
  func.func @transform_0(%arg0: i32, %arg1: i32) -> (i32, i32) {
    %c0_i32 = arith.constant 0 : i32
    %c0_i32_0 = arith.constant 0 : i32
    return %arg0, %c0_i32 : i32, i32
  }
  func.func @transform_1(%arg0: i32, %arg1: i32) -> (i32, i32) {
    %c0_i32 = arith.constant 0 : i32
    %c0_i32_0 = arith.constant 0 : i32
    %c0_i32_1 = arith.constant 0 : i32
    return %c0_i32, %c0_i32_0 : i32, i32
  }
  func.func @transform_2(%arg0: i32, %arg1: i32) -> (i32, i32) {
    %c0_i32 = arith.constant 0 : i32
    %c0_i32_0 = arith.constant 0 : i32
    %c0_i32_1 = arith.constant 0 : i32
    return %c0_i32, %c0_i32_0 : i32, i32
  }
  func.func @transform_3(%arg0: i32, %arg1: i32) -> (i32, i32) {
    %c0_i32 = arith.constant 0 : i32
    %c0_i32_0 = arith.constant 0 : i32
    %c0_i32_1 = arith.constant 0 : i32
    return %c0_i32, %c0_i32_0 : i32, i32
  }
  func.func @transform_4(%arg0: i32, %arg1: i32) -> (i32, i32) {
    %c0_i32 = arith.constant 0 : i32
    %c0_i32_0 = arith.constant 0 : i32
    %c0_i32_1 = arith.constant 0 : i32
    return %c0_i32, %c0_i32_0 : i32, i32
  }
  func.func @transform_5(%arg0: i32, %arg1: i32) -> (i32, i32) {
    %c0_i32 = arith.constant 0 : i32
    %c0_i32_0 = arith.constant 0 : i32
    return %c0_i32, %arg1 : i32, i32
  }
  func.func @transform_6(%arg0: i32, %arg1: i32) -> (i32, i32) {
    %c0_i32 = arith.constant 0 : i32
    %c0_i32_0 = arith.constant 0 : i32
    return %c0_i32, %arg1 : i32, i32
  }
  func.func @transform_7(%arg0: i32, %arg1: i32) -> (i32, i32) {
    %c0_i32 = arith.constant 0 : i32
    return %arg0, %arg1 : i32, i32
  }
}

</mosaic_0001>

<llo_original>
// kernel: tpu_custom_call.1
$region0: #{tpu_custom_call.1}
  #allocation0 [shape = 'u32[]', space=smem, size = 0x4, offset = 0x4, fixed_abs, tag = 'smem constant byte address 0x4 - core index']
  #allocation1 [shape = 'u32[144,128]{1,0:T(1,128)}', space=vmem, size = 0x12000, scoped, tag = 'internal scratch']
  #allocation2 [shape = 'bf16[16,64]{1,0:T(8,128)(2,1)}', space=vmem, size = 0x1000, scoped, tag = 'scratch operand']
  %s0 = inlined_call_operand.hbm [shape: bf16[16,32], index: 0, kind: input, shape index: {}]
  %s1 = inlined_call_operand.hbm [shape: bf16[32,64], index: 1, kind: input, shape index: {}]
  %s2 = inlined_call_operand.vmem [shape: f32[1,64], index: 2, kind: input, shape index: {}]
  %s3 = inlined_call_operand.vmem [shape: f32[1,64], index: 3, kind: input, shape index: {}]
  %s4 = inlined_call_operand.vmem [shape: f32[1,64], index: 4, kind: input, shape index: {}]
  %s5 = inlined_call_operand.hbm [shape: bf16[64,128], index: 5, kind: input, shape index: {}]
  %s6 = inlined_call_operand.vmem [shape: f32[1,128], index: 6, kind: input, shape index: {}]
  %s7 = inlined_call_operand.hbm [shape: bf16[16,128], index: 7, kind: output, shape index: {}]
  %s8 = sld [smem:[#allocation0]]
  $region54: #{tpu_custom_call.1} parent=0
    _
  %s10 = ssub.s32 1, %s8
  %s11 = scalar_select 0, %s10, %s8
  $region1: #{tpu_custom_call.1} parent=0
    #allocation3 [shape = 'u8[4096]{0}', space=vmem, size = 0x1000, scoped, tag = 'input window, operand 0, single buffered']
    #allocation4 [shape = 's32[1]{0}', space=sflag, size = 0x4, scoped, tag = 'scoped memory for tpu_custom_call.1']
    #allocation5 [shape = 's32[1]{0}', space=sflag, size = 0x4, scoped, tag = 'scoped memory for tpu_custom_call.1']
    #allocation6 [shape = 'u8[8192]{0}', space=vmem, size = 0x2000, scoped, tag = 'input window, operand 1, single buffered']
    #allocation7 [shape = 's32[1]{0}', space=sflag, size = 0x4, scoped, tag = 'scoped memory for tpu_custom_call.1']
    #allocation8 [shape = 'u8[16384]{0}', space=vmem, size = 0x4000, scoped, tag = 'input window, operand 5, single buffered']
    #allocation9 [shape = 'u8[4096]{0}', space=vmem, size = 0x1000, scoped, tag = 'output window, operand 0, single buffered']
    %12 = vsyncpa [#allocation4], 0
    %13 = vsyncpa [#allocation7], 0
    %14 = vsyncpa [#allocation5], 0
    // Predicated region
    $region2: #{tpu_custom_call.1} parent=1 // pred_check
      _
    $region3: #{tpu_custom_call.1} parent=1 // pred_check_branch
      %16 = sbr.rel (0) target = $region5
    $region4: #{tpu_custom_call.1} parent=1 // pred_region
      %s18 = ssub.s32 128, 128
      %19 = vsyncadd [#allocation4], %s18
      %s20 = sshll.u32 [#allocation3], 4
      %s21 = int_to_ptr.vmem [resolvable:$true] %s20
      %26 = dma.hbm_to_vmem [thread:$0]  %s0, 128, %s21, [#allocation4], 64, 64, 4
    $region5: #{tpu_custom_call.1} parent=1 // pred_fallthru
      _
    // Predicated region
    $region6: #{tpu_custom_call.1} parent=1 // pred_check
      _
    $region7: #{tpu_custom_call.1} parent=1 // pred_check_branch
      %28 = sbr.rel (0) target = $region9
    $region8: #{tpu_custom_call.1} parent=1 // pred_region
      %s30 = ssub.s32 256, 256
      %31 = vsyncadd [#allocation7], %s30
      %s32 = sshll.u32 [#allocation6], 4
      %s33 = int_to_ptr.vmem [resolvable:$true] %s32
      %38 = dma.hbm_to_vmem [thread:$0]  %s1, 256, %s33, [#allocation7], 64, 64, 4
    $region9: #{tpu_custom_call.1} parent=1 // pred_fallthru
      _
    // Predicated region
    $region10: #{tpu_custom_call.1} parent=1 // pred_check
      _
    $region11: #{tpu_custom_call.1} parent=1 // pred_check_branch
      %40 = sbr.rel (0) target = $region13
    $region12: #{tpu_custom_call.1} parent=1 // pred_region
      _
    $region13: #{tpu_custom_call.1} parent=1 // pred_fallthru
      _
    // Predicated region
    $region14: #{tpu_custom_call.1} parent=1 // pred_check
      _
    $region15: #{tpu_custom_call.1} parent=1 // pred_check_branch
      %42 = sbr.rel (0) target = $region17
    $region16: #{tpu_custom_call.1} parent=1 // pred_region
      _
    $region17: #{tpu_custom_call.1} parent=1 // pred_fallthru
      _
    // Predicated region
    $region18: #{tpu_custom_call.1} parent=1 // pred_check
      _
    $region19: #{tpu_custom_call.1} parent=1 // pred_check_branch
      %44 = sbr.rel (0) target = $region21
    $region20: #{tpu_custom_call.1} parent=1 // pred_region
      _
    $region21: #{tpu_custom_call.1} parent=1 // pred_fallthru
      _
    // Predicated region
    $region22: #{tpu_custom_call.1} parent=1 // pred_check
      _
    $region23: #{tpu_custom_call.1} parent=1 // pred_check_branch
      %46 = sbr.rel (0) target = $region25
    $region24: #{tpu_custom_call.1} parent=1 // pred_region
      %s48 = ssub.s32 512, 512
      %49 = vsyncadd [#allocation7], %s48
      %s50 = sshll.u32 [#allocation8], 4
      %s51 = int_to_ptr.vmem [resolvable:$true] %s50
      %56 = dma.hbm_to_vmem [thread:$0]  %s5, 512, %s51, [#allocation7], 64, 64, 4
    $region25: #{tpu_custom_call.1} parent=1 // pred_fallthru
      _
    // Predicated region
    $region26: #{tpu_custom_call.1} parent=1 // pred_check
      _
    $region27: #{tpu_custom_call.1} parent=1 // pred_check_branch
      %58 = sbr.rel (0) target = $region29
    $region28: #{tpu_custom_call.1} parent=1 // pred_region
      _
    $region29: #{tpu_custom_call.1} parent=1 // pred_fallthru
      _
    // Predicated region
    $region30: #{tpu_custom_call.1} parent=1 // pred_check
      _
    $region31: #{tpu_custom_call.1} parent=1 // pred_check_branch
      %60 = sbr.rel (0) target = $region33
    $region32: #{tpu_custom_call.1} parent=1 // pred_region
      %61 = dma.done [#allocation4], 128
    $region33: #{tpu_custom_call.1} parent=1 // pred_fallthru
      _
    // Predicated region
    $region34: #{tpu_custom_call.1} parent=1 // pred_check
      _
    $region35: #{tpu_custom_call.1} parent=1 // pred_check_branch
      %63 = sbr.rel (0) target = $region37
    $region36: #{tpu_custom_call.1} parent=1 // pred_region
      %64 = dma.done [#allocation7], 256
    $region37: #{tpu_custom_call.1} parent=1 // pred_fallthru
      _
    // Predicated region
    $region38: #{tpu_custom_call.1} parent=1 // pred_check
      _
    $region39: #{tpu_custom_call.1} parent=1 // pred_check_branch
      %66 = sbr.rel (0) target = $region41
    $region40: #{tpu_custom_call.1} parent=1 // pred_region
      %67 = dma.done [#allocation7], 512
    $region41: #{tpu_custom_call.1} parent=1 // pred_fallthru
      _
    %p69 = scmp.eq.s32.totalorder 0, 0
    // Predicated region
    $region42: #{tpu_custom_call.1} parent=1 // pred_check
      %p70 = pneg %p69
    $region43: #{tpu_custom_call.1} parent=1 // pred_check_branch
      %72 = sbr.rel (%p70) target = $region45
    $region44: #{tpu_custom_call.1} parent=1 // pred_region
      %v73 = vld [vmem:[#allocation3] sm:$0xf]
      %v74 = vld [vmem:[#allocation3 + $0x4] sm:$0xf]
      %v75 = vld [vmem:[#allocation6] sm:$0xf]
      %v76 = vld [vmem:[#allocation6 + $0x4] sm:$0xf]
      %v77 = vld [vmem:[#allocation6 + $0x8] sm:$0xf]
      %v78 = vld [vmem:[#allocation6 + $0xc] sm:$0xf]
      %v79 = vld [vmem:[%s2] sm:$0x1]
      %v81 = vlaneseq
      %v82 = vshrl.u32 %v81, 7
      %v83 = vsub.s32 0, %v82
      %v84 = vrot.slane %v79, %v83
      %v88 = vunpack.c.l.b16 %v73
      %v89 = vunpack.c.l.b16 %v74
      %v90 = vpack.c.b16 %v89, %v88
      %v95 = vunpack.c.l.b16 %v75
      %v96 = vunpack.c.l.b16 %v76
      %v97 = vunpack.c.l.b16 %v77
      %v98 = vunpack.c.l.b16 %v78
      %v99 = vpack.c.b16 %v96, %v95
      %v100 = vpack.c.b16 %v98, %v97
      %vm103 = vcmask 261120
      %v105 = vsel %vm103, %v90, 0
      %107 = vmatprep.subr.bf16.mxu0 0
      %108 = vmatpush1.bf16.msra.mxu0 0
      %109 = vmatprep.subr.bf16.mxu0 0
      %110 = vmatpush1.bf16.msra.mxu0 0
      %111 = vmatprep.subr.bf16.mxu0 0
      %112 = vmatpush1.bf16.msra.mxu0 0
      %113 = vmatprep.subr.bf16.mxu0 0
      %114 = vmatpush1.bf16.msra.mxu0 0
      %115 = vmatprep.subr.bf16.mxu0 0
      %116 = vmatpush1.bf16.msra.mxu0 0
      %117 = vmatprep.subr.bf16.mxu0 0
      %118 = vmatpush1.bf16.msra.mxu0 0
      %119 = vmatprep.subr.bf16.mxu0 0
      %120 = vmatpush1.bf16.msra.mxu0 %v100
      %121 = vmatprep.subr.bf16.mxu0 0
      %122 = vmatpush1.bf16.msra.mxu0 %v99
      %123 = vmatprep.subr.bf16.mxu0 0
      %124 = vmatpush2.bf16.msra.mxu0 0
      %125 = vmatprep.subr.bf16.mxu0 0
      %126 = vmatpush2.bf16.msra.mxu0 0
      %127 = vmatprep.subr.bf16.mxu0 0
      %128 = vmatpush2.bf16.msra.mxu0 0
      %129 = vmatprep.subr.bf16.mxu0 0
      %130 = vmatpush2.bf16.msra.mxu0 0
      %131 = vmatprep.subr.bf16.mxu0 0
      %132 = vmatpush2.bf16.msra.mxu0 0
      %133 = vmatprep.subr.bf16.mxu0 0
      %134 = vmatpush2.bf16.msra.mxu0 0
      %135 = vmatprep.subr.bf16.mxu0 0
      %136 = vmatpush2.bf16.msra.mxu0 0
      %137 = vmatprep.subr.bf16.mxu0 0
      %138 = vmatpush2.bf16.msra.mxu0 0
      %139 = vmatprep.mubr.bf16.mxu0 0
      %140 = vmatmul.mubr.bf16.gmra.mxu0 %v105
      %v141 = vpop.f32.mrf.mxu0
      %v142 = vadd.f32 %v84, %v141
      %v143 = vpop.f32.mrf.mxu0
      %v144 = vpop.f32.mrf.mxu0
      %v145 = vadd.f32 %v84, %v144
      %v146 = vpop.f32.mrf.mxu0
      %147 = vdwg.mxu0
      %v148 = vmul.f32 %v142, 0.5
      %v149 = vmul.f32 %v145, 0.5
      %v150 = vmul.f32 %v142, 0.70710677
      %v151 = vmul.f32 %v145, 0.70710677
      %v152 = verf.f32.pop %v150
      %v153 = verf.f32.pop %v151
      %v154 = vadd.f32 %v152, 1.0
      %v155 = vadd.f32 %v153, 1.0
      %v156 = vmul.f32 %v148, %v154
      %v157 = vmul.f32 %v149, %v155
      %vm158 = vcmask 523264
      %v159 = vsel %vm158, %v156, 0.0
      %160 = vadd.xlane.f32.xlu0 %v159
      %v161 = vpop.xlane.xlu0 %160
      %v162 = vsel %vm158, %v157, 0.0
      %163 = vadd.xlane.f32.xlu0 %v162
      %v164 = vpop.xlane.xlu0 %163
      %v165 = vrcp.pop 64.0
      %v166 = vmul.f32 %v161, %v165
      %v167 = vmul.f32 %v164, %v165
      %v168 = vsub.f32 %v156, %v166
      %v169 = vsub.f32 %v157, %v167
      %v170 = vmul.f32 %v168, %v168
      %v171 = vmul.f32 %v169, %v169
      %v172 = vsel %vm158, %v170, 0.0
      %173 = vadd.xlane.f32.xlu0 %v172
      %v174 = vpop.xlane.xlu0 %173
      %v175 = vsel %vm158, %v171, 0.0
      %176 = vadd.xlane.f32.xlu0 %v175
      %v177 = vpop.xlane.xlu0 %176
      %v178 = vmul.f32 %v174, %v165
      %v179 = vmul.f32 %v177, %v165
      %v180 = vadd.f32 %v178, 1e-12
      %v181 = vadd.f32 %v179, 1e-12
      %v182 = vrsqrt.pop %v180
      %v183 = vrsqrt.pop %v181
      %v184 = vmul.f32 %v168, %v182
      %v185 = vmul.f32 %v169, %v183
      %v186 = vld [vmem:[%s3] sm:$0x1]
      %v188 = vlaneseq
      %v189 = vshrl.u32 %v188, 7
      %v190 = vsub.s32 0, %v189
      %v191 = vrot.slane %v186, %v190
      %v193 = vmul.f32 %v184, %v191
      %v194 = vmul.f32 %v185, %v191
      %v195 = vld [vmem:[%s4] sm:$0x1]
      %v197 = vlaneseq
      %v198 = vshrl.u32 %v197, 7
      %v199 = vsub.s32 0, %v198
      %v200 = vrot.slane %v195, %v199
      %v202 = vadd.f32 %v193, %v200
      %v203 = vadd.f32 %v194, %v200
      %v204 = vpack.c.bf16 %v203, %v202
      %v206 = vunpack.c.l.b16 %v204
      %v207 = vunpack.c.h.b16 %v204
      %v208 = vpack.c.b16 %v206, %v206
      %v209 = vpack.c.b16 %v207, %v207
      %vm212 = vcmask 519168
      %213 = vst.msk [vmem:[#allocation2] sm:$0xf] %vm212, %v208
      %214 = vst.msk [vmem:[#allocation2 + $0x4] sm:$0xf] %vm212, %v209
    $region45: #{tpu_custom_call.1} parent=1 // pred_fallthru
      _
    %v215 = vld [vmem:[#allocation2] sm:$0xf]
    %v216 = vld [vmem:[#allocation2 + $0x4] sm:$0xf]
    %v217 = vld [vmem:[#allocation8] sm:$0xf]
    %v218 = vld [vmem:[#allocation8 + $0x4] sm:$0xf]
    %v219 = vld [vmem:[#allocation8 + $0x8] sm:$0xf]
    %v220 = vld [vmem:[#allocation8 + $0xc] sm:$0xf]
    %v221 = vld [vmem:[#allocation8 + $0x10] sm:$0xf]
    %v222 = vld [vmem:[#allocation8 + $0x14] sm:$0xf]
    %v223 = vld [vmem:[#allocation8 + $0x18] sm:$0xf]
    %v224 = vld [vmem:[#allocation8 + $0x1c] sm:$0xf]
    %v225 = vld [vmem:[%s6] sm:$0x1]
    %v227 = vlaneseq
    %v228 = vshrl.u32 %v227, 7
    %v229 = vsub.s32 0, %v228
    %v230 = vrot.slane %v225, %v229
    %v234 = vunpack.c.l.b16 %v215
    %v235 = vunpack.c.l.b16 %v216
    %v236 = vpack.c.b16 %v235, %v234
    %v245 = vunpack.c.l.b16 %v217
    %v246 = vunpack.c.l.b16 %v218
    %v247 = vunpack.c.l.b16 %v219
    %v248 = vunpack.c.l.b16 %v220
    %v249 = vunpack.c.l.b16 %v221
    %v250 = vunpack.c.l.b16 %v222
    %v251 = vunpack.c.l.b16 %v223
    %v252 = vunpack.c.l.b16 %v224
    %v253 = vpack.c.b16 %v246, %v245
    %v254 = vpack.c.b16 %v248, %v247
    %v255 = vpack.c.b16 %v250, %v249
    %v256 = vpack.c.b16 %v252, %v251
    %vm261 = vcmask 523264
    %v263 = vsel %vm261, %v236, 0
    %265 = vmatprep.subr.bf16.mxu0 0
    %266 = vmatpush1.bf16.msra.mxu0 0
    %267 = vmatprep.subr.bf16.mxu0 0
    %268 = vmatpush1.bf16.msra.mxu0 0
    %269 = vmatprep.subr.bf16.mxu0 0
    %270 = vmatpush1.bf16.msra.mxu0 0
    %271 = vmatprep.subr.bf16.mxu0 0
    %272 = vmatpush1.bf16.msra.mxu0 0
    %273 = vmatprep.subr.bf16.mxu0 0
    %274 = vmatpush1.bf16.msra.mxu0 %v256
    %275 = vmatprep.subr.bf16.mxu0 0
    %276 = vmatpush1.bf16.msra.mxu0 %v255
    %277 = vmatprep.subr.bf16.mxu0 0
    %278 = vmatpush1.bf16.msra.mxu0 %v254
    %279 = vmatprep.subr.bf16.mxu0 0
    %280 = vmatpush1.bf16.msra.mxu0 %v253
    %281 = vmatprep.subr.bf16.mxu0 0
    %282 = vmatpush2.bf16.msra.mxu0 0
    %283 = vmatprep.subr.bf16.mxu0 0
    %284 = vmatpush2.bf16.msra.mxu0 0
    %285 = vmatprep.subr.bf16.mxu0 0
    %286 = vmatpush2.bf16.msra.mxu0 0
    %287 = vmatprep.subr.bf16.mxu0 0
    %288 = vmatpush2.bf16.msra.mxu0 0
    %289 = vmatprep.subr.bf16.mxu0 0
    %290 = vmatpush2.bf16.msra.mxu0 0
    %291 = vmatprep.subr.bf16.mxu0 0
    %292 = vmatpush2.bf16.msra.mxu0 0
    %293 = vmatprep.subr.bf16.mxu0 0
    %294 = vmatpush2.bf16.msra.mxu0 0
    %295 = vmatprep.subr.bf16.mxu0 0
    %296 = vmatpush2.bf16.msra.mxu0 0
    %297 = vmatprep.mubr.bf16.mxu0 0
    %298 = vmatmul.mubr.bf16.gmra.mxu0 %v263
    %v299 = vpop.f32.mrf.mxu0
    %v300 = vadd.f32 %v230, %v299
    %v301 = vpop.f32.mrf.mxu0
    %v302 = vpop.f32.mrf.mxu0
    %v303 = vadd.f32 %v230, %v302
    %v304 = vpop.f32.mrf.mxu0
    %305 = vdwg.mxu0
    %v306 = vpack.c.bf16 %v303, %v300
    %v308 = vunpack.c.l.b16 %v306
    %v309 = vunpack.c.h.b16 %v306
    %v310 = vpack.c.b16 %v308, %v308
    %v311 = vpack.c.b16 %v309, %v309
    %314 = vst [vmem:[#allocation9] sm:$0xf] %v310
    %315 = vst [vmem:[#allocation9 + $0x4] sm:$0xf] %v311
    // Predicated region
    $region46: #{tpu_custom_call.1} parent=1 // pred_check
      _
    $region47: #{tpu_custom_call.1} parent=1 // pred_check_branch
      %317 = sbr.rel (0) target = $region49
    $region48: #{tpu_custom_call.1} parent=1 // pred_region
      %s319 = ssub.s32 128, 128
      %320 = vsyncadd [#allocation5], %s319
      %s321 = sshll.u32 [#allocation9], 4
      %s322 = int_to_ptr.vmem [resolvable:$true] %s321
      %327 = dma.vmem_to_hbm [thread:$0]  %s322, 128, %s7, [#allocation5], 64, 64, 4
    $region49: #{tpu_custom_call.1} parent=1 // pred_fallthru
      _
    // Predicated region
    $region50: #{tpu_custom_call.1} parent=1 // pred_check
      _
    $region51: #{tpu_custom_call.1} parent=1 // pred_check_branch
      %329 = sbr.rel (0) target = $region53
    $region52: #{tpu_custom_call.1} parent=1 // pred_region
      %330 = dma.done [#allocation5], 128
    $region53: #{tpu_custom_call.1} parent=1 // pred_fallthru
      _
    %331 = vsyncpa [#allocation4], 1
    %332 = vsyncpa [#allocation7], 1
    %333 = vsyncpa [#allocation5], 1

</llo_original>
